<compile_context>
chip_gen: v7x
topology: tpu7x:2x2x1
jax: 0.10.0
libtpu: 0.0.40
codegen_flags: <defaults>
</compile_context>

<pallas_src>
import jax
import jax.numpy as jnp
from jax.experimental import pallas as pl
from jax.experimental.pallas import tpu as pltpu


def _round_up(x, m):
    return ((x + m - 1) // m) * m


def _tpu_generation():
    """Best-effort TPU generation detection (None if unknown)."""
    try:
        kind = jax.devices()[0].device_kind.lower()
    except Exception:
        return None
    if "v5" in kind:
        return 5
    if "v6" in kind:
        return 6
    if "v7" in kind or "tpu7" in kind or "7x" in kind:
        return 7
    return None


def _attention_kernel(si_ref, hj_ref, wt_ref, vt_ref, b_ref, fcw_ref,
                      ctx_ref, attn_ref):
    # si_ref  : (bt, Dd)      batch chunk of Si_1 (size-1 dim squeezed in wrapper)
    # hj_ref  : (bt, T, De)   batch chunk of Hj (possibly bf16-streamed)
    # wt_ref  : (Dd, A)       W.weight^T (resident)
    # vt_ref  : (De, A)       V.weight^T (resident)
    # b_ref   : (1, A)        learnable bias b (resident)
    # fcw_ref : (1, A)        fc.weight row vector (resident)
    # ctx_ref : (bt, De)      context output (lane/sublane dense)
    # attn_ref: (bt, Tp)      attention weights, T padded up to a multiple of 128
    bt, T, De = hj_ref.shape
    Tp = attn_ref.shape[-1]

    # Single up-cast of the streamed hj chunk; everything downstream is f32.
    H3 = hj_ref[...].astype(jnp.float32)                    # (bt, T, De)
    H2 = H3.reshape(bt * T, De)                             # layout no-op when T % 8 == 0

    # The two real matmuls -> MXU, contraction on the lane axis, f32 accumulate.
    Ws = jnp.dot(si_ref[...], wt_ref[...],
                 preferred_element_type=jnp.float32)        # (bt, A)
    VH = jnp.dot(H2, vt_ref[...],
                 preferred_element_type=jnp.float32)        # (bt*T, A)

    A = Ws.shape[-1]
    # Bias hoisted into the small (bt, A) term before the (bt, T, A) broadcast.
    Wsb = Ws + b_ref[...]                                   # (bt, A)
    z = jnp.tanh(VH.reshape(bt, T, A) + Wsb[:, None, :])    # (bt, T, A)

    # fc(...) as a VPU multiply + lane reduction (an N=1 matmul wastes the MXU).
    # fc.bias is a uniform shift -> exact no-op under softmax; omitted.
    score = jnp.sum(z * fcw_ref[...], axis=-1)              # (bt, T)

    # Numerically stable softmax over T; reciprocal goes to the EUP.
    m = jnp.max(score, axis=-1, keepdims=True)
    p = jnp.exp(score - m)
    denom = jnp.sum(p, axis=-1, keepdims=True)
    attn = p * pl.reciprocal(denom, approx=True)            # (bt, T)

    # context = attn @ Hj per batch row (VPU multiply + sublane reduce).
    ctx = jnp.sum(attn[:, :, None] * H3, axis=1)            # (bt, De)

    ctx_ref[...] = ctx.astype(ctx_ref.dtype)

    if Tp == T:
        attn_ref[...] = attn.astype(attn_ref.dtype)
    else:
        # Zero-pad the lane axis so the store is a full, unmasked 128-wide vst;
        # the wrapper slices the padding back off.
        pad = jnp.zeros((bt, Tp - T), dtype=attn_ref.dtype)
        attn_ref[...] = jnp.concatenate([attn.astype(attn_ref.dtype), pad],
                                        axis=-1)


def attention_pallas(si, hj, w, v, b, fc_w, fc_b, *, block_b=None,
                     stream_bf16=None):
    """Forward pass of the LAS Attention module.

    si: (B, 1, Dd), hj: (B, T, De)
    w: (A, Dd), v: (A, De), b: (A,), fc_w: (1, A), fc_b: (1,)   (PyTorch layout)
    Returns (context (B, 1, De), attn_weight (B, T)).

    fc_b is accepted for interface fidelity; it shifts all scores uniformly and
    cancels exactly under softmax, so neither returned value depends on it.
    """
    del fc_b
    B, _, Dd = si.shape
    _, T, De = hj.shape
    A = w.shape[0]

    gen = _tpu_generation()

    # dtype of the dominant HBM stream (hj): bf16 halves the bandwidth-bound DMA
    # on v6e/v7x; in-kernel math stays f32 (one up-cast right after load).
    if stream_bf16 is None:
        stream_bf16 = gen in (6, 7)
    if stream_bf16 and hj.dtype == jnp.float32:
        hj_s = hj.astype(jnp.bfloat16)
    else:
        hj_s = hj
    hj_bytes = hj_s.dtype.itemsize

    # Pre-transposed weights: contraction on the lane axis, no in-kernel XLU.
    wt = w.T.astype(jnp.float32)                # (Dd, A)
    vt = v.T.astype(jnp.float32)                # (De, A)
    b2 = b.reshape(1, A).astype(jnp.float32)
    fcw2 = fc_w.reshape(1, A).astype(jnp.float32)
    si2 = si.reshape(B, Dd)                     # drop the size-1 sublane dim

    Tp = _round_up(T, 128)                      # lane-dense attn output width

    # Per-generation VMEM budget / explicit scoped-VMEM limit.
    if gen in (5, 6):
        vmem_limit = 96 * 1024 * 1024           # 128 MiB physical
    else:                                       # v7x (64 MiB physical) / unknown
        vmem_limit = 48 * 1024 * 1024

    per_row = (2 * T * De * hj_bytes            # hj block, double-buffered
               + T * De * 4                     # f32 up-cast of hj
               + T * De * 4                     # attn[:,:,None] * H broadcast temp
               + 2 * T * A * 4                  # VH + z f32 temporaries
               + 2 * Tp * 4                     # attn output block, double-buffered
               + 2 * De * 4                     # ctx output block, double-buffered
               + 2 * Dd * 4)                    # si input block, double-buffered
    fixed = 2 * 4 * (Dd * A + De * A + 2 * A)   # resident weights (x2 buffers)
    budget = int(vmem_limit * 0.80) - fixed - (2 << 20)

    if block_b is not None:
        bt = B if block_b >= B else max(8, (block_b // 8) * 8)
    else:
        bt = max(8, budget // max(per_row, 1))
        if gen == 7 and B > 8:
            # keep >= 2 grid steps so both v7x TensorCores get work
            bt = min(bt, max(8, (((B + 1) // 2) // 8) * 8))
        bt = B if bt >= B else max(8, (bt // 8) * 8)
        # NOTE: if even bt == 8 overflowed the budget (very long T), an
        # online-softmax second grid axis over T would be needed; not required
        # at these shapes.

    grid = (pl.cdiv(B, bt),)

    grid_spec = pltpu.PrefetchScalarGridSpec(
        num_scalar_prefetch=0,
        grid=grid,
        in_specs=[
            pl.BlockSpec((bt, Dd), lambda i: (i, 0)),        # Si_1 chunk
            pl.BlockSpec((bt, T, De), lambda i: (i, 0, 0)),  # Hj chunk (streamed)
            pl.BlockSpec((Dd, A), lambda i: (0, 0)),         # W^T   (resident)
            pl.BlockSpec((De, A), lambda i: (0, 0)),         # V^T   (resident)
            pl.BlockSpec((1, A), lambda i: (0, 0)),          # b     (resident)
            pl.BlockSpec((1, A), lambda i: (0, 0)),          # fc.weight
        ],
        out_specs=[
            pl.BlockSpec((bt, De), lambda i: (i, 0)),        # context (dense)
            pl.BlockSpec((bt, Tp), lambda i: (i, 0)),        # attn (lane-padded)
        ],
    )

    ctx2, attn_p = pl.pallas_call(
        _attention_kernel,
        out_shape=(
            jax.ShapeDtypeStruct((B, De), si.dtype),
            jax.ShapeDtypeStruct((B, Tp), si.dtype),
        ),
        grid_spec=grid_spec,
        compiler_params=pltpu.CompilerParams(
            dimension_semantics=("parallel",),
            vmem_limit_bytes=vmem_limit),
    )(si2, hj_s, wt, vt, b2, fcw2)

    return ctx2.reshape(B, 1, De), attn_p[:, :T]


def attention_ref(si, hj, w, v, b, fc_w, fc_b):
    """Pure-JAX reference matching the PyTorch forward exactly (incl. fc bias)."""
    Ws = jnp.einsum("bqd,ad->bqa", si, w)                          # (B, 1, A)
    VH = jnp.einsum("btd,ad->bta", hj, v)                          # (B, T, A)
    z = jnp.tanh(Ws + VH + b)                                      # (B, T, A)
    score = jnp.einsum("bta,oa->bto", z, fc_w)[..., 0] + fc_b[0]   # (B, T)
    attn = jax.nn.softmax(score, axis=-1)
    ctx = jnp.einsum("bt,btd->bd", attn, hj)[:, None, :]           # (B, 1, De)
    return ctx, attn


if __name__ == "__main__":
    def make_case(key, B, T, Dd, De, A):
        ks = jax.random.split(key, 7)
        Si_1 = jax.random.normal(ks[0], (B, 1, Dd), jnp.float32)
        Hj = jax.random.normal(ks[1], (B, T, De), jnp.float32)
        W_w = jax.random.normal(ks[2], (A, Dd), jnp.float32) * 0.1
        V_w = jax.random.normal(ks[3], (A, De), jnp.float32) * 0.1
        b = jax.random.uniform(ks[4], (A,), jnp.float32)
        fc_w = jax.random.normal(ks[5], (1, A), jnp.float32) * 0.1
        fc_b = jax.random.normal(ks[6], (1,), jnp.float32) * 0.1
        return Si_1, Hj, W_w, V_w, b, fc_w, fc_b

    k1, k2 = jax.random.split(jax.random.PRNGKey(0))

    # Case 1: module-sized small test (single grid step, full-batch block).
    args1 = make_case(k1, B=2, T=8, Dd=32, De=32, A=32)
    ctx, attn = attention_pallas(*args1)
    ctx = jax.block_until_ready(ctx)
    attn = jax.block_until_ready(attn)
    ctx_r, attn_r = attention_ref(*args1)
    assert ctx.shape == (2, 1, 32) and attn.shape == (2, 8)
    assert jnp.allclose(ctx, ctx_r, rtol=2e-2, atol=2e-2)
    assert jnp.allclose(attn, attn_r, rtol=2e-2, atol=2e-2)

    # Case 2: multi-step grid (forced batch chunk) exercising the tiled path.
    args2 = make_case(k2, B=16, T=24, Dd=32, De=32, A=32)
    ctx2, attn2 = attention_pallas(*args2, block_b=8)
    ctx2 = jax.block_until_ready(ctx2)
    attn2 = jax.block_until_ready(attn2)
    ctx2_r, attn2_r = attention_ref(*args2)
    assert ctx2.shape == (16, 1, 32) and attn2.shape == (16, 24)
    assert jnp.allclose(ctx2, ctx2_r, rtol=2e-2, atol=2e-2)
    assert jnp.allclose(attn2, attn2_r, rtol=2e-2, atol=2e-2)

    print("KERNEL_OK")
</pallas_src>

<mosaic_0001>
module attributes {stable_mosaic.version = 11 : i64} {
  func.func @_attention_kernel(%arg0: i32, %arg1: memref<2x32xf32, #tpu.memory_space<vmem>>, %arg2: memref<2x8x32xf32, #tpu.memory_space<vmem>>, %arg3: memref<32x32xf32, #tpu.memory_space<vmem>>, %arg4: memref<32x32xf32, #tpu.memory_space<vmem>>, %arg5: memref<1x32xf32, #tpu.memory_space<vmem>>, %arg6: memref<1x32xf32, #tpu.memory_space<vmem>>, %arg7: memref<2x32xf32, #tpu.memory_space<vmem>>, %arg8: memref<2x128xf32, #tpu.memory_space<vmem>>) attributes {dimension_semantics = [#tpu.dimension_semantics<parallel>], iteration_bounds = array<i64: 1>, scalar_prefetch = 0 : i64, scratch_operands = 0 : i64, tpu.core_type = #tpu.core_type<tc>, window_params = [{transform_indices = @transform_0, window_bounds = array<i64: 2, 32>}, {transform_indices = @transform_1, window_bounds = array<i64: 2, 8, 32>}, {pipeline_mode = #tpu.pipeline_mode<synchronous>, transform_indices = @transform_2, window_bounds = array<i64: 32, 32>}, {pipeline_mode = #tpu.pipeline_mode<synchronous>, transform_indices = @transform_3, window_bounds = array<i64: 32, 32>}, {pipeline_mode = #tpu.pipeline_mode<synchronous>, transform_indices = @transform_4, window_bounds = array<i64: 1, 32>}, {pipeline_mode = #tpu.pipeline_mode<synchronous>, transform_indices = @transform_5, window_bounds = array<i64: 1, 32>}, {transform_indices = @transform_6, window_bounds = array<i64: 2, 32>}, {transform_indices = @transform_7, window_bounds = array<i64: 2, 128>}]} {
    %c0 = arith.constant 0 : index
    %c0_0 = arith.constant 0 : index
    %c0_1 = arith.constant 0 : index
    %0 = vector.load %arg2[%c0, %c0_0, %c0_1] : memref<2x8x32xf32, #tpu.memory_space<vmem>>, vector<2x8x32xf32>
    %1 = vector.shape_cast %0 : vector<2x8x32xf32> to vector<16x32xf32>
    %c0_2 = arith.constant 0 : index
    %c0_3 = arith.constant 0 : index
    %2 = vector.load %arg1[%c0_2, %c0_3] : memref<2x32xf32, #tpu.memory_space<vmem>>, vector<2x32xf32>
    %c0_4 = arith.constant 0 : index
    %c0_5 = arith.constant 0 : index
    %3 = vector.load %arg3[%c0_4, %c0_5] : memref<32x32xf32, #tpu.memory_space<vmem>>, vector<32x32xf32>
    %cst = arith.constant dense<0.000000e+00> : vector<2x32xf32>
    %4 = tpu.matmul %2, %3, %cst {dimension_numbers = #tpu.dot_dimension_numbers<[1], [0], [0], [1], [0, 0, 1, 1], [], []>} : vector<2x32xf32>, vector<32x32xf32>, vector<2x32xf32> -> vector<2x32xf32>
    %c0_6 = arith.constant 0 : index
    %c0_7 = arith.constant 0 : index
    %5 = vector.load %arg4[%c0_6, %c0_7] : memref<32x32xf32, #tpu.memory_space<vmem>>, vector<32x32xf32>
    %cst_8 = arith.constant dense<0.000000e+00> : vector<16x32xf32>
    %6 = tpu.matmul %1, %5, %cst_8 {dimension_numbers = #tpu.dot_dimension_numbers<[1], [0], [0], [1], [0, 0, 1, 1], [], []>} : vector<16x32xf32>, vector<32x32xf32>, vector<16x32xf32> -> vector<16x32xf32>
    %c0_9 = arith.constant 0 : index
    %c0_10 = arith.constant 0 : index
    %7 = vector.load %arg5[%c0_9, %c0_10] : memref<1x32xf32, #tpu.memory_space<vmem>>, vector<1x32xf32>
    %8 = vector.broadcast %7 : vector<1x32xf32> to vector<2x32xf32>
    %9 = arith.addf %4, %8 : vector<2x32xf32>
    %10 = vector.shape_cast %6 : vector<16x32xf32> to vector<2x8x32xf32>
    %11 = vector.shape_cast %9 : vector<2x32xf32> to vector<2x1x32xf32>
    %12 = vector.broadcast %11 : vector<2x1x32xf32> to vector<2x8x32xf32>
    %13 = arith.addf %10, %12 : vector<2x8x32xf32>
    %14 = math.tanh %13 : vector<2x8x32xf32>
    %c0_11 = arith.constant 0 : index
    %c0_12 = arith.constant 0 : index
    %15 = vector.load %arg6[%c0_11, %c0_12] : memref<1x32xf32, #tpu.memory_space<vmem>>, vector<1x32xf32>
    %16 = vector.shape_cast %15 : vector<1x32xf32> to vector<1x1x32xf32>
    %17 = vector.broadcast %16 : vector<1x1x32xf32> to vector<2x8x32xf32>
    %18 = arith.mulf %14, %17 : vector<2x8x32xf32>
    %cst_13 = arith.constant dense<0.000000e+00> : vector<2x8xf32>
    %19 = vector.multi_reduction <add>, %18, %cst_13 [2] : vector<2x8x32xf32> to vector<2x8xf32>
    %cst_14 = arith.constant dense<0xFF800000> : vector<2xf32>
    %20 = vector.multi_reduction <maximumf>, %19, %cst_14 [1] : vector<2x8xf32> to vector<2xf32>
    %21 = vector.shape_cast %20 : vector<2xf32> to vector<2x1xf32>
    %22 = vector.broadcast %21 : vector<2x1xf32> to vector<2x8xf32>
    %23 = arith.subf %19, %22 : vector<2x8xf32>
    %24 = math.exp %23 : vector<2x8xf32>
    %cst_15 = arith.constant dense<0.000000e+00> : vector<2xf32>
    %25 = vector.multi_reduction <add>, %24, %cst_15 [1] : vector<2x8xf32> to vector<2xf32>
    %26 = vector.shape_cast %25 : vector<2xf32> to vector<2x1xf32>
    %27 = tpu.reciprocal %26 {approx = true} : vector<2x1xf32> -> vector<2x1xf32>
    %28 = vector.broadcast %27 : vector<2x1xf32> to vector<2x8xf32>
    %29 = arith.mulf %24, %28 : vector<2x8xf32>
    %30 = vector.shape_cast %29 : vector<2x8xf32> to vector<2x8x1xf32>
    %31 = vector.broadcast %30 : vector<2x8x1xf32> to vector<2x8x32xf32>
    %32 = arith.mulf %31, %0 : vector<2x8x32xf32>
    %cst_16 = arith.constant dense<0.000000e+00> : vector<2x32xf32>
    %33 = vector.multi_reduction <add>, %32, %cst_16 [1] : vector<2x8x32xf32> to vector<2x32xf32>
    %c0_17 = arith.constant 0 : index
    %c0_18 = arith.constant 0 : index
    %34 = vector.load %arg7[%c0_17, %c0_18] : memref<2x32xf32, #tpu.memory_space<vmem>>, vector<2x32xf32>
    tpu.vector_store %arg7[%c0_17, %c0_18], %33 {strides = array<i32>} : memref<2x32xf32, #tpu.memory_space<vmem>>, vector<2x32xf32>,
    %cst_19 = arith.constant 0.000000e+00 : f32
    %35 = vector.broadcast %cst_19 : f32 to vector<2x120xf32>
    %36 = tpu.concatenate %29, %35 in 1 : vector<2x8xf32>, vector<2x120xf32> -> vector<2x128xf32>
    %c0_20 = arith.constant 0 : index
    %c0_21 = arith.constant 0 : index
    %37 = vector.load %arg8[%c0_20, %c0_21] : memref<2x128xf32, #tpu.memory_space<vmem>>, vector<2x128xf32>
    tpu.vector_store %arg8[%c0_20, %c0_21], %36 {strides = array<i32>} : memref<2x128xf32, #tpu.memory_space<vmem>>, vector<2x128xf32>,
    return
  }
  func.func @transform_0(%arg0: i32) -> (i32, i32) {
    %c0_i32 = arith.constant 0 : i32
    %c0_i32_0 = arith.constant 0 : i32
    return %arg0, %c0_i32 : i32, i32
  }
  func.func @transform_1(%arg0: i32) -> (i32, i32, i32) {
    %c0_i32 = arith.constant 0 : i32
    %c0_i32_0 = arith.constant 0 : i32
    %c0_i32_1 = arith.constant 0 : i32
    return %arg0, %c0_i32, %c0_i32_0 : i32, i32, i32
  }
  func.func @transform_2(%arg0: i32) -> (i32, i32) {
    %c0_i32 = arith.constant 0 : i32
    %c0_i32_0 = arith.constant 0 : i32
    %c0_i32_1 = arith.constant 0 : i32
    return %c0_i32, %c0_i32_0 : i32, i32
  }
  func.func @transform_3(%arg0: i32) -> (i32, i32) {
    %c0_i32 = arith.constant 0 : i32
    %c0_i32_0 = arith.constant 0 : i32
    %c0_i32_1 = arith.constant 0 : i32
    return %c0_i32, %c0_i32_0 : i32, i32
  }
  func.func @transform_4(%arg0: i32) -> (i32, i32) {
    %c0_i32 = arith.constant 0 : i32
    %c0_i32_0 = arith.constant 0 : i32
    %c0_i32_1 = arith.constant 0 : i32
    return %c0_i32, %c0_i32_0 : i32, i32
  }
  func.func @transform_5(%arg0: i32) -> (i32, i32) {
    %c0_i32 = arith.constant 0 : i32
    %c0_i32_0 = arith.constant 0 : i32
    %c0_i32_1 = arith.constant 0 : i32
    return %c0_i32, %c0_i32_0 : i32, i32
  }
  func.func @transform_6(%arg0: i32) -> (i32, i32) {
    %c0_i32 = arith.constant 0 : i32
    %c0_i32_0 = arith.constant 0 : i32
    return %arg0, %c0_i32 : i32, i32
  }
  func.func @transform_7(%arg0: i32) -> (i32, i32) {
    %c0_i32 = arith.constant 0 : i32
    %c0_i32_0 = arith.constant 0 : i32
    return %arg0, %c0_i32 : i32, i32
  }
}

</mosaic_0001>

<llo_original>
// kernel: tpu_custom_call.1
$region0: #{tpu_custom_call.1}
  #allocation0 [shape = 'u32[]', space=smem, size = 0x4, offset = 0x4, fixed_abs, tag = 'smem constant byte address 0x4 - core index']
  #allocation1 [shape = 'u32[144,128]{1,0:T(1,128)}', space=vmem, size = 0x12000, scoped, tag = 'internal scratch']
  %s0 = inlined_call_operand.hbm [shape: f32[2,32], index: 0, kind: input, shape index: {}]
  %s1 = inlined_call_operand.hbm [shape: f32[2,8,32], index: 1, kind: input, shape index: {}]
  %s2 = inlined_call_operand.hbm [shape: f32[32,32], index: 2, kind: input, shape index: {}]
  %s3 = inlined_call_operand.hbm [shape: f32[32,32], index: 3, kind: input, shape index: {}]
  %s4 = inlined_call_operand.vmem [shape: f32[1,32], index: 4, kind: input, shape index: {}]
  %s5 = inlined_call_operand.vmem [shape: f32[1,32], index: 5, kind: input, shape index: {}]
  %s6 = inlined_call_operand.hbm [shape: f32[2,32], index: 6, kind: output, shape index: {0}]
  %s7 = inlined_call_operand.hbm [shape: f32[2,128], index: 7, kind: output, shape index: {1}]
  %8 = xla_tuple %s6, %s7
  %s9 = sld [smem:[#allocation0]]
  $region58: #{tpu_custom_call.1} parent=0
    _
  %s11 = ssub.s32 1, %s9
  %s12 = scalar_select 0, %s11, %s9
  $region1: #{tpu_custom_call.1} parent=0
    #allocation2 [shape = 'u8[1024]{0}', space=vmem, size = 0x400, scoped, tag = 'input window, operand 0, single buffered']
    #allocation3 [shape = 's32[1]{0}', space=sflag, size = 0x4, scoped, tag = 'scoped memory for tpu_custom_call.1']
    #allocation4 [shape = 's32[1]{0}', space=sflag, size = 0x4, scoped, tag = 'scoped memory for tpu_custom_call.1']
    #allocation5 [shape = 'u8[8192]{0}', space=vmem, size = 0x2000, scoped, tag = 'input window, operand 1, single buffered']
    #allocation6 [shape = 's32[1]{0}', space=sflag, size = 0x4, scoped, tag = 'scoped memory for tpu_custom_call.1']
    #allocation7 [shape = 'u8[16384]{0}', space=vmem, size = 0x4000, scoped, tag = 'input window, operand 2, single buffered']
    #allocation8 [shape = 'u8[16384]{0}', space=vmem, size = 0x4000, scoped, tag = 'input window, operand 3, single buffered']
    #allocation9 [shape = 's32[1]{0}', space=sflag, size = 0x4, scoped, tag = 'scoped memory for tpu_custom_call.1']
    #allocation10 [shape = 'u8[1024]{0}', space=vmem, size = 0x400, scoped, tag = 'output window, operand 0, single buffered']
    #allocation11 [shape = 'u8[1024]{0}', space=vmem, size = 0x400, scoped, tag = 'output window, operand 1, single buffered']
    #allocation12 [shape = 's32[1]{0}', space=sflag, size = 0x4, scoped, tag = 'scoped memory for tpu_custom_call.1']
    %13 = vsyncpa [#allocation3], 0
    %14 = vsyncpa [#allocation6], 0
    %15 = vsyncpa [#allocation9], 0
    %16 = vsyncpa [#allocation4], 0
    %17 = vsyncpa [#allocation12], 0
    // Predicated region
    $region2: #{tpu_custom_call.1} parent=1 // pred_check
      _
    $region3: #{tpu_custom_call.1} parent=1 // pred_check_branch
      %19 = sbr.rel (0) target = $region5
    $region4: #{tpu_custom_call.1} parent=1 // pred_region
      %s21 = ssub.s32 32, 32
      %22 = vsyncadd [#allocation3], %s21
      %s24 = sshll.u32 [#allocation2], 4
      %s25 = int_to_ptr.vmem [resolvable:$true] %s24
      %27 = dma.hbm_to_vmem [thread:$0]  %s0, 32, %s25, [#allocation3]
    $region5: #{tpu_custom_call.1} parent=1 // pred_fallthru
      _
    // Predicated region
    $region6: #{tpu_custom_call.1} parent=1 // pred_check
      _
    $region7: #{tpu_custom_call.1} parent=1 // pred_check_branch
      %29 = sbr.rel (0) target = $region9
    $region8: #{tpu_custom_call.1} parent=1 // pred_region
      %s31 = ssub.s32 256, 256
      %32 = vsyncadd [#allocation6], %s31
      %s33 = sshll.u32 [#allocation5], 4
      %s34 = int_to_ptr.vmem [resolvable:$true] %s33
      %39 = dma.hbm_to_vmem [thread:$0]  %s1, 256, %s34, [#allocation6], 128, 128, 8
    $region9: #{tpu_custom_call.1} parent=1 // pred_fallthru
      _
    // Predicated region
    $region10: #{tpu_custom_call.1} parent=1 // pred_check
      _
    $region11: #{tpu_custom_call.1} parent=1 // pred_check_branch
      %41 = sbr.rel (0) target = $region13
    $region12: #{tpu_custom_call.1} parent=1 // pred_region
      %s43 = ssub.s32 512, 512
      %44 = vsyncadd [#allocation6], %s43
      %s45 = sshll.u32 [#allocation7], 4
      %s46 = int_to_ptr.vmem [resolvable:$true] %s45
      %51 = dma.hbm_to_vmem [thread:$0]  %s2, 512, %s46, [#allocation6], 128, 128, 8
    $region13: #{tpu_custom_call.1} parent=1 // pred_fallthru
      _
    // Predicated region
    $region14: #{tpu_custom_call.1} parent=1 // pred_check
      _
    $region15: #{tpu_custom_call.1} parent=1 // pred_check_branch
      %53 = sbr.rel (0) target = $region17
    $region16: #{tpu_custom_call.1} parent=1 // pred_region
      %s55 = ssub.s32 512, 512
      %56 = vsyncadd [#allocation9], %s55
      %s57 = sshll.u32 [#allocation8], 4
      %s58 = int_to_ptr.vmem [resolvable:$true] %s57
      %63 = dma.hbm_to_vmem [thread:$0]  %s3, 512, %s58, [#allocation9], 128, 128, 8
    $region17: #{tpu_custom_call.1} parent=1 // pred_fallthru
      _
    // Predicated region
    $region18: #{tpu_custom_call.1} parent=1 // pred_check
      _
    $region19: #{tpu_custom_call.1} parent=1 // pred_check_branch
      %65 = sbr.rel (0) target = $region21
    $region20: #{tpu_custom_call.1} parent=1 // pred_region
      _
    $region21: #{tpu_custom_call.1} parent=1 // pred_fallthru
      _
    // Predicated region
    $region22: #{tpu_custom_call.1} parent=1 // pred_check
      _
    $region23: #{tpu_custom_call.1} parent=1 // pred_check_branch
      %67 = sbr.rel (0) target = $region25
    $region24: #{tpu_custom_call.1} parent=1 // pred_region
      _
    $region25: #{tpu_custom_call.1} parent=1 // pred_fallthru
      _
    // Predicated region
    $region26: #{tpu_custom_call.1} parent=1 // pred_check
      _
    $region27: #{tpu_custom_call.1} parent=1 // pred_check_branch
      %69 = sbr.rel (0) target = $region29
    $region28: #{tpu_custom_call.1} parent=1 // pred_region
      %70 = dma.done [#allocation3], 32
    $region29: #{tpu_custom_call.1} parent=1 // pred_fallthru
      _
    // Predicated region
    $region30: #{tpu_custom_call.1} parent=1 // pred_check
      _
    $region31: #{tpu_custom_call.1} parent=1 // pred_check_branch
      %72 = sbr.rel (0) target = $region33
    $region32: #{tpu_custom_call.1} parent=1 // pred_region
      %73 = dma.done [#allocation6], 256
    $region33: #{tpu_custom_call.1} parent=1 // pred_fallthru
      _
    // Predicated region
    $region34: #{tpu_custom_call.1} parent=1 // pred_check
      _
    $region35: #{tpu_custom_call.1} parent=1 // pred_check_branch
      %75 = sbr.rel (0) target = $region37
    $region36: #{tpu_custom_call.1} parent=1 // pred_region
      %76 = dma.done [#allocation6], 512
    $region37: #{tpu_custom_call.1} parent=1 // pred_fallthru
      _
    // Predicated region
    $region38: #{tpu_custom_call.1} parent=1 // pred_check
      _
    $region39: #{tpu_custom_call.1} parent=1 // pred_check_branch
      %78 = sbr.rel (0) target = $region41
    $region40: #{tpu_custom_call.1} parent=1 // pred_region
      %79 = dma.done [#allocation9], 512
    $region41: #{tpu_custom_call.1} parent=1 // pred_fallthru
      _
    %v80 = vld [vmem:[#allocation5] sm:$0xff]
    %v81 = vld [vmem:[#allocation5 + $0x8] sm:$0xff]
    %v82 = vld [vmem:[#allocation2] sm:$0x3]
    %v83 = vld [vmem:[#allocation7] sm:$0xff]
    %v84 = vld [vmem:[#allocation7 + $0x8] sm:$0xff]
    %v85 = vld [vmem:[#allocation7 + $0x10] sm:$0xff]
    %v86 = vld [vmem:[#allocation7 + $0x18] sm:$0xff]
    %v87 = vld [vmem:[#allocation8] sm:$0xff]
    %v88 = vld [vmem:[#allocation8 + $0x8] sm:$0xff]
    %v89 = vld [vmem:[#allocation8 + $0x10] sm:$0xff]
    %v90 = vld [vmem:[#allocation8 + $0x18] sm:$0xff]
    %vm91 = vcmask 261120
    %v93 = vsel %vm91, %v80, 0
    %v96 = vsel %vm91, %v81, 0
    %98 = vmatprep.subr.mxu0 0.0
    %99 = vmatpush1.msra.mxu0 %v87
    %100 = vmatprep.subr.mxu0 0.0
    %101 = vmatpush1.msra.mxu0 %v88
    %102 = vmatprep.subr.mxu0 0.0
    %103 = vmatpush1.msra.mxu0 %v89
    %104 = vmatprep.subr.mxu0 0.0
    %105 = vmatpush1.msra.mxu0 %v90
    %106 = vmatprep.subr.mxu0 0.0
    %107 = vmatpush1.msra.mxu0 0.0
    %108 = vmatprep.subr.mxu0 0.0
    %109 = vmatpush1.msra.mxu0 0.0
    %110 = vmatprep.subr.mxu0 0.0
    %111 = vmatpush1.msra.mxu0 0.0
    %112 = vmatprep.subr.mxu0 0.0
    %113 = vmatpush1.msra.mxu0 0.0
    %114 = vmatprep.subr.mxu0 0.0
    %115 = vmatpush1.msra.mxu0 0.0
    %116 = vmatprep.subr.mxu0 0.0
    %117 = vmatpush1.msra.mxu0 0.0
    %118 = vmatprep.subr.mxu0 0.0
    %119 = vmatpush1.msra.mxu0 0.0
    %120 = vmatprep.subr.mxu0 0.0
    %121 = vmatpush1.msra.mxu0 0.0
    %122 = vmatprep.subr.mxu0 0.0
    %123 = vmatpush1.msra.mxu0 0.0
    %124 = vmatprep.subr.mxu0 0.0
    %125 = vmatpush1.msra.mxu0 0.0
    %126 = vmatprep.subr.mxu0 0.0
    %127 = vmatpush1.msra.mxu0 0.0
    %128 = vmatprep.subr.mxu0 0.0
    %129 = vmatpush1.msra.mxu0 0.0
    %130 = vmatprep.subr.mxu0 0.0
    %131 = vmatpush1.msra.mxu0 0.0
    %132 = vmatprep.subr.mxu0 0.0
    %133 = vmatpush1.msra.mxu0 0.0
    %134 = vmatprep.subr.mxu0 0.0
    %135 = vmatpush1.msra.mxu0 0.0
    %136 = vmatprep.subr.mxu0 0.0
    %137 = vmatpush1.msra.mxu0 0.0
    %138 = vmatprep.subr.mxu0 0.0
    %139 = vmatpush1.msra.mxu0 0.0
    %140 = vmatprep.subr.mxu0 0.0
    %141 = vmatpush1.msra.mxu0 0.0
    %142 = vmatprep.subr.mxu0 0.0
    %143 = vmatpush1.msra.mxu0 0.0
    %144 = vmatprep.subr.mxu0 0.0
    %145 = vmatpush1.msra.mxu0 0.0
    %146 = vmatprep.subr.mxu0 0.0
    %147 = vmatpush1.msra.mxu0 0.0
    %148 = vmatprep.subr.mxu0 0.0
    %149 = vmatpush1.msra.mxu0 0.0
    %150 = vmatprep.subr.mxu0 0.0
    %151 = vmatpush1.msra.mxu0 0.0
    %152 = vmatprep.subr.mxu0 0.0
    %153 = vmatpush1.msra.mxu0 0.0
    %154 = vmatprep.subr.mxu0 0.0
    %155 = vmatpush1.msra.mxu0 0.0
    %156 = vmatprep.subr.mxu0 0.0
    %157 = vmatpush1.msra.mxu0 0.0
    %158 = vmatprep.subr.mxu0 0.0
    %159 = vmatpush1.msra.mxu0 0.0
    %160 = vmatprep.subr.mxu0 0.0
    %161 = vmatpush1.msra.mxu0 0.0
    %162 = vmatprep.mubr.f32.mxu0 0.0
    %163 = vmatmul.mubr.f32.gmra.mrb[0].mxu0 %v93
    %v164 = vpop.f32.mrb[0].mxu0
    %v165 = vadd.f32 0.0, %v164
    %v166 = vpop.f32.mrb[0].mxu0
    %167 = vmatprep.mubr.f32.mxu0 0.0
    %168 = vmatmul.mubr.f32.gmra.mrb[0].mxu0 %v96
    %v169 = vpop.f32.mrb[0].mxu0
    %v170 = vadd.f32 0.0, %v169
    %v171 = vpop.f32.mrb[0].mxu0
    %172 = vdwg.mxu0
    %v173 = vld [vmem:[%s4] sm:$0x1]
    %v175 = vlaneseq
    %v176 = vshrl.u32 %v175, 7
    %v177 = vsub.s32 0, %v176
    %v178 = vrot.slane %v173, %v177
    %v181 = vsel %vm91, %v82, 0
    %183 = vmatprep.subr.mxu0 0.0
    %184 = vmatpush1.msra.mxu0 %v83
    %185 = vmatprep.subr.mxu0 0.0
    %186 = vmatpush1.msra.mxu0 %v84
    %187 = vmatprep.subr.mxu0 0.0
    %188 = vmatpush1.msra.mxu0 %v85
    %189 = vmatprep.subr.mxu0 0.0
    %190 = vmatpush1.msra.mxu0 %v86
    %191 = vmatprep.subr.mxu0 0.0
    %192 = vmatpush1.msra.mxu0 0.0
    %193 = vmatprep.subr.mxu0 0.0
    %194 = vmatpush1.msra.mxu0 0.0
    %195 = vmatprep.subr.mxu0 0.0
    %196 = vmatpush1.msra.mxu0 0.0
    %197 = vmatprep.subr.mxu0 0.0
    %198 = vmatpush1.msra.mxu0 0.0
    %199 = vmatprep.subr.mxu0 0.0
    %200 = vmatpush1.msra.mxu0 0.0
    %201 = vmatprep.subr.mxu0 0.0
    %202 = vmatpush1.msra.mxu0 0.0
    %203 = vmatprep.subr.mxu0 0.0
    %204 = vmatpush1.msra.mxu0 0.0
    %205 = vmatprep.subr.mxu0 0.0
    %206 = vmatpush1.msra.mxu0 0.0
    %207 = vmatprep.subr.mxu0 0.0
    %208 = vmatpush1.msra.mxu0 0.0
    %209 = vmatprep.subr.mxu0 0.0
    %210 = vmatpush1.msra.mxu0 0.0
    %211 = vmatprep.subr.mxu0 0.0
    %212 = vmatpush1.msra.mxu0 0.0
    %213 = vmatprep.subr.mxu0 0.0
    %214 = vmatpush1.msra.mxu0 0.0
    %215 = vmatprep.subr.mxu0 0.0
    %216 = vmatpush1.msra.mxu0 0.0
    %217 = vmatprep.subr.mxu0 0.0
    %218 = vmatpush1.msra.mxu0 0.0
    %219 = vmatprep.subr.mxu0 0.0
    %220 = vmatpush1.msra.mxu0 0.0
    %221 = vmatprep.subr.mxu0 0.0
    %222 = vmatpush1.msra.mxu0 0.0
    %223 = vmatprep.subr.mxu0 0.0
    %224 = vmatpush1.msra.mxu0 0.0
    %225 = vmatprep.subr.mxu0 0.0
    %226 = vmatpush1.msra.mxu0 0.0
    %227 = vmatprep.subr.mxu0 0.0
    %228 = vmatpush1.msra.mxu0 0.0
    %229 = vmatprep.subr.mxu0 0.0
    %230 = vmatpush1.msra.mxu0 0.0
    %231 = vmatprep.subr.mxu0 0.0
    %232 = vmatpush1.msra.mxu0 0.0
    %233 = vmatprep.subr.mxu0 0.0
    %234 = vmatpush1.msra.mxu0 0.0
    %235 = vmatprep.subr.mxu0 0.0
    %236 = vmatpush1.msra.mxu0 0.0
    %237 = vmatprep.subr.mxu0 0.0
    %238 = vmatpush1.msra.mxu0 0.0
    %239 = vmatprep.subr.mxu0 0.0
    %240 = vmatpush1.msra.mxu0 0.0
    %241 = vmatprep.subr.mxu0 0.0
    %242 = vmatpush1.msra.mxu0 0.0
    %243 = vmatprep.subr.mxu0 0.0
    %244 = vmatpush1.msra.mxu0 0.0
    %245 = vmatprep.subr.mxu0 0.0
    %246 = vmatpush1.msra.mxu0 0.0
    %247 = vmatprep.mubr.f32.mxu0 0.0
    %248 = vmatmul.mubr.f32.gmra.mrb[0].mxu0 %v181
    %v249 = vpop.f32.mrb[0].mxu0
    %v250 = vadd.f32 %v178, %v249
    %v251 = vpop.f32.mrb[0].mxu0
    %252 = vdwg.mxu0
    %v255 = vunpack.c.l.s4 1966171168
    %v256 = vunpack.c.0.s8 %v255
    %v257 = vlaneseq
    %v258 = vshrl.u32 %v257, 7
    %v259 = vsub.s32 %v256, %v258
    %v260 = vrot.slane %v250, %v259
    %v261 = vcombine.high %v260, %v260
    %v263 = vunpack.c.l.s4 1966171168
    %v264 = vunpack.c.0.s8 %v263
    %v265 = vlaneseq
    %v266 = vshrl.u32 %v265, 7
    %v267 = vsub.s32 %v264, %v266
    %v268 = vrot.slane %v260, %v267
    %v270 = vunpack.c.l.s4 1966171168
    %v271 = vunpack.c.0.s8 %v270
    %v272 = vlaneseq
    %v273 = vshrl.u32 %v272, 7
    %v274 = vsub.s32 %v271, %v273
    %v275 = vrot.slane %v261, %v274
    %v276 = vlaneseq
    %v277 = vshrl.u32 %v276, 7
    %v278 = vsub.s32 0, %v277
    %v279 = vrot.slane %v268, %v278
    %v280 = vlaneseq
    %v281 = vshrl.u32 %v280, 7
    %v282 = vsub.s32 0, %v281
    %v283 = vrot.slane %v275, %v282
    %v286 = vadd.f32 %v165, %v279
    %v287 = vadd.f32 %v170, %v283
    %v288 = vtanh.pop %v286
    %v289 = vtanh.pop %v287
    %v290 = vld [vmem:[%s5] sm:$0x1]
    %v292 = vlaneseq
    %v293 = vshrl.u32 %v292, 7
    %v294 = vsub.s32 0, %v293
    %v295 = vrot.slane %v290, %v294
    %v297 = vmul.f32 %v288, %v295
    %v298 = vmul.f32 %v289, %v295
    %v299 = vsel %vm91, %v297, 0.0
    %300 = vadd.xlane.f32.xlu0 %v299
    %v301 = vpop.xlane.xlu0 %300
    %v302 = vsel %vm91, %v298, 0.0
    %303 = vadd.xlane.f32.xlu0 %v302
    %v304 = vpop.xlane.xlu0 %303
    %v307 = vlaneseq
    %v308 = vand.u32 %v307, 127
    %v309 = vlaneseq
    %v310 = vshrl.u32 %v309, 7
    %v311 = vsub.s32 %v308, %v310
    %v312 = vrot.slane %v301, %v311
    %v313 = vlaneseq
    %v314 = vshrl.u32 %v313, 7
    %v315 = vsub.s32 %v308, %v314
    %v316 = vrot.slane %v304, %v315
    %vm317 = vcmask 1041409
    %v318 = vsel %vm317, %v316, %v312
    %vm320 = vcmask 58368
    %v321 = vsel %vm320, %v318, -inf
    %322 = vmax.xlane.f32.xlu0 %v321
    %v323 = vpop.xlane.xlu0 %322
    %v325 = vlaneseq
    %v326 = vshrl.u32 %v325, 7
    %v327 = vsub.s32 0, %v326
    %v328 = vrot.slane %v323, %v327
    %v329 = vlaneseq
    %v330 = vshrl.u32 %v329, 7
    %v331 = vsub.s32 1, %v330
    %v332 = vrot.slane %v323, %v331
    %v335 = vsub.f32 %v301, %v328
    %v336 = vsub.f32 %v304, %v332
    %v337 = vmul.f32 %v335, 1.442695
    %v338 = vpow.pop %v337
    %v339 = vmul.f32 %v336, 1.442695
    %v340 = vpow.pop %v339
    %343 = vset.pattern.permute.xlu0 0
    %344 = vperm.xlu0 %343, %v338
    %v345 = vpop.permute.xlu0 %344
    %346 = vset.pattern.permute.xlu0 0
    %347 = vperm.xlu0 %346, %v340
    %v348 = vpop.permute.xlu0 %347
    %v349 = vlaneseq
    %v350 = vshrl.u32 %v349, 7
    %v351 = vsub.s32 %v308, %v350
    %v352 = vrot.slane %v345, %v351
    %v353 = vlaneseq
    %v354 = vshrl.u32 %v353, 7
    %v355 = vsub.s32 %v308, %v354
    %v356 = vrot.slane %v348, %v355
    %v357 = vsel %vm317, %v356, %v352
    %v359 = vsel %vm320, %v357, 0.0
    %360 = vadd.xlane.f32.xlu0 %v359
    %v361 = vpop.xlane.xlu0 %360
    %v362 = vrcp.pop %v361
    %v364 = vlaneseq
    %v365 = vshrl.u32 %v364, 7
    %v366 = vsub.s32 0, %v365
    %v367 = vrot.slane %v362, %v366
    %v368 = vlaneseq
    %v369 = vshrl.u32 %v368, 7
    %v370 = vsub.s32 1, %v369
    %v371 = vrot.slane %v362, %v370
    %v374 = vmul.f32 %v338, %v367
    %v375 = vmul.f32 %v340, %v371
    %377 = vset.pattern.permute.xlu0 0
    %378 = vperm.xlu0 %377, %v374
    %v379 = vpop.permute.xlu0 %378
    %382 = vset.pattern.permute.xlu0 0
    %383 = vperm.xlu0 %382, %v375
    %v384 = vpop.permute.xlu0 %383
    %v386 = vmul.f32 %v379, %v80
    %v387 = vmul.f32 %v384, %v81
    %v388 = vsel %vm91, %v386, 0.0
    %v389 = vrot.slane %v388, 4
    %v390 = vadd.f32 %v388, %v389
    %v391 = vrot.slane %v390, 2
    %v392 = vadd.f32 %v390, %v391
    %v393 = vrot.slane %v392, 1
    %v394 = vadd.f32 %v392, %v393
    %v395 = vsel %vm91, %v387, 0.0
    %v396 = vrot.slane %v395, 4
    %v397 = vadd.f32 %v395, %v396
    %v398 = vrot.slane %v397, 2
    %v399 = vadd.f32 %v397, %v398
    %v400 = vrot.slane %v399, 1
    %v401 = vadd.f32 %v399, %v400
    %v404 = vsel %vm317, %v401, %v394
    %vm406 = vcmask 254976
    %407 = vst.msk [vmem:[#allocation10] sm:$0x3] %vm406, %v404
    %v408 = vlaneseq
    %v409 = vshrl.u32 %v408, 7
    %v410 = vsub.s32 %v308, %v409
    %v411 = vrot.slane %v379, %v410
    %v412 = vlaneseq
    %v413 = vshrl.u32 %v412, 7
    %v414 = vsub.s32 %v308, %v413
    %v415 = vrot.slane %v384, %v414
    %v416 = vsel %vm317, %v415, %v411
    %vm418 = vcmask 64512
    %v419 = vsel %vm418, %v416, 0.0
    %420 = vst [vmem:[#allocation11] sm:$0x3] %v419
    // Predicated region
    $region42: #{tpu_custom_call.1} parent=1 // pred_check
      _
    $region43: #{tpu_custom_call.1} parent=1 // pred_check_branch
      %422 = sbr.rel (0) target = $region45
    $region44: #{tpu_custom_call.1} parent=1 // pred_region
      %s424 = ssub.s32 32, 32
      %425 = vsyncadd [#allocation4], %s424
      %s427 = sshll.u32 [#allocation10], 4
      %s428 = int_to_ptr.vmem [resolvable:$true] %s427
      %430 = dma.vmem_to_hbm [thread:$0]  %s428, 32, %s6, [#allocation4]
    $region45: #{tpu_custom_call.1} parent=1 // pred_fallthru
      _
    // Predicated region
    $region46: #{tpu_custom_call.1} parent=1 // pred_check
      _
    $region47: #{tpu_custom_call.1} parent=1 // pred_check_branch
      %432 = sbr.rel (0) target = $region49
    $region48: #{tpu_custom_call.1} parent=1 // pred_region
      %s434 = ssub.s32 32, 32
      %435 = vsyncadd [#allocation12], %s434
      %s437 = sshll.u32 [#allocation11], 4
      %s438 = int_to_ptr.vmem [resolvable:$true] %s437
      %440 = dma.vmem_to_hbm [thread:$0]  %s438, 32, %s7, [#allocation12]
    $region49: #{tpu_custom_call.1} parent=1 // pred_fallthru
      _
    // Predicated region
    $region50: #{tpu_custom_call.1} parent=1 // pred_check
      _
    $region51: #{tpu_custom_call.1} parent=1 // pred_check_branch
      %442 = sbr.rel (0) target = $region53
    $region52: #{tpu_custom_call.1} parent=1 // pred_region
      %443 = dma.done [#allocation4], 32
    $region53: #{tpu_custom_call.1} parent=1 // pred_fallthru
      _
    // Predicated region
    $region54: #{tpu_custom_call.1} parent=1 // pred_check
      _
    $region55: #{tpu_custom_call.1} parent=1 // pred_check_branch
      %445 = sbr.rel (0) target = $region57
    $region56: #{tpu_custom_call.1} parent=1 // pred_region
      %446 = dma.done [#allocation12], 32
    $region57: #{tpu_custom_call.1} parent=1 // pred_fallthru
      _
    %447 = vsyncpa [#allocation3], 1
    %448 = vsyncpa [#allocation6], 1
    %449 = vsyncpa [#allocation9], 1
    %450 = vsyncpa [#allocation4], 1
    %451 = vsyncpa [#allocation12], 1

</llo_original>
